<compile_context>
chip_gen: v5e
topology: v5e:2x2
jax: 0.10.0
libtpu: 0.0.40
codegen_flags: <defaults>
</compile_context>

<pallas_src>
import functools
import math

import jax
import jax.numpy as jnp
from jax import lax
from jax.experimental import pallas as pl
from jax.experimental.pallas import tpu as pltpu

KW = 17  # conv kernel width / stride (hard-coded in the PyTorch module)


def _dyn_graph_conv_kernel(at_ref, w_ref, x_ref, o_ref, waf_ref, *,
                           bb, compute_dtype):
    """One grid step: `bb` batch samples x one TW tile.

    at_ref  : (bb, C_in, C_out)  per-sample A^T                         (f32)
    w_ref   : (KW, C_in, C_out)  static conv weight (resident)          (f32)
    x_ref   : (bb, KW*C, tw)     x slab, rows = kw*C + c_in, lanes = t  (compute_dtype)
    o_ref   : (bb, C_out, tw)    output, lanes = t (lane-dense stores)
    waf_ref : (bb, KW*C, C_out)  VMEM scratch: cached dynamic weight    (compute_dtype)
    """
    n_kw, c_in, c_out = w_ref.shape

    # Rebuild the per-sample dynamic weight only on the first TW tile of this
    # batch block (the TW grid axis is 'arbitrary', so this runs before all
    # other ti iterations of the same bi on the same core).
    @pl.when(pl.program_id(1) == 0)
    def _build_waf():
        w3 = w_ref[...]                                  # (KW, C_in, C_out) f32

        def build(b, carry):
            # waf[kw*C_in + i, o] = weight[o, i, kw] * A[o, i]   (f32 VPU work,
            # cast to compute_dtype only once per batch block)
            waf = (w3 * at_ref[b][None, :, :]).reshape(n_kw * c_in, c_out)
            waf_ref[b] = waf.astype(compute_dtype)
            return carry

        lax.fori_loop(0, bb, build, 0, unroll=bb <= 2)

    # Main compute: whole 17-tap grouped conv as ONE matmul per sample,
    # K = KW*C, accumulated in f32 on the MXU.
    def compute(b, carry):
        out = lax.dot_general(waf_ref[b], x_ref[b], (((0,), (0,)), ((), ())),
                              preferred_element_type=jnp.float32)   # (C_out, tw)
        o_ref[b] = out.astype(o_ref.dtype)
        return carry

    lax.fori_loop(0, bb, compute, 0, unroll=bb <= 4)


def _round_up(x, m):
    return (x + m - 1) // m * m


def _vmem_budget():
    """Generation-aware VMEM budget (bytes) with compiler-scratch headroom."""
    cap = 64 * 1024 * 1024
    try:
        cap = int(pltpu.get_tpu_info().vmem_capacity_bytes)
    except Exception:
        pass
    if cap >= 128 * 1024 * 1024:          # v5e / v6e: 128 MiB physical
        return 100 * 1024 * 1024
    # v7x: 64 MiB per TensorCore -> leave headroom for internal scratch
    return max(cap - 8 * 1024 * 1024, cap * 3 // 4)


def _pick_blocks(B, TW, C, KWC, in_isz, out_isz, comp_isz, vmem_budget,
                 max_bb=8, max_tw_tile=1024):
    """Pick (bb, tw, TW_pad, vmem_need) honouring layout rules and the budget."""
    # Batch block: amortize per-step overhead, but keep >= 2 bi grid steps when
    # B > 1 so megacore (v7x) can shard the 'parallel' batch axis (the TW axis
    # is 'arbitrary' because of the waf cache and cannot be sharded).
    bb = max(1, min(max_bb, B // 2 if B > 1 else 1))
    while B % bb:
        bb -= 1

    # TW tile: full extent when small (always legal), otherwise a 128-multiple
    # tile; the wrapper zero-pads TW up to a multiple of the tile.
    tw = TW if TW <= max_tw_tile else max_tw_tile

    def vmem_need(bb_, tw_):
        lanes = _round_up(max(tw_, 1), 128)
        rows_x = _round_up(KWC, 32)
        rows_o = _round_up(C, 32)
        c_lane = _round_up(C, 128)
        return (2 * bb_ * lanes * (rows_x * in_isz + rows_o * out_isz)  # x/out dbl-buffered
                + 2 * KW * C * c_lane * 4                               # w3 f32 (dbl-buffered)
                + 2 * bb_ * C * c_lane * 4                              # At f32 (dbl-buffered)
                + bb_ * rows_x * c_lane * comp_isz)                     # waf scratch

    # Shrink bb first (keeps the big lane-dense tw, the main measured lever) ...
    while vmem_need(bb, tw) > vmem_budget and bb > 1:
        bb -= 1
        while B % bb:
            bb -= 1
    # ... then shrink tw (stays a multiple of 128; wrapper pads TW accordingly).
    while vmem_need(bb, tw) > vmem_budget and tw > 128:
        tw = max(128, _round_up(tw // 2, 128))

    if tw >= TW:
        tw = TW
        TW_pad = TW
    else:
        TW_pad = _round_up(TW, tw)
    return bb, tw, TW_pad, vmem_need(bb, tw)


def dynamic_graph_conv(x, params, *, compute_dtype=jnp.float32, out_dtype=None):
    """Forward pass of Dynamic_Graph_Conv. Returns (y, [P, Q]).

    compute_dtype=jnp.bfloat16 feeds the bf16 MXU fast path and halves x DMA
    bytes (recommended on v6e/v7x); the adjacency, the waf broadcast-mul and
    all matmul accumulation stay in float32 either way.  out_dtype controls
    the kernel-output dtype (defaults to x.dtype).
    """
    P, Q, weight, W1, b1, W2, b2 = (params[k] for k in
                                    ("P", "Q", "weight", "W1", "b1", "W2", "b2"))
    B, C, T, V = x.shape
    L = P.shape[1]
    wout = (V - KW) // KW + 1
    TW = T * wout
    KWC = KW * C
    out_dtype = x.dtype if out_dtype is None else out_dtype

    # ---------- glue (tiny, plain JAX, f32): avg pool + MLP + adjacency ----------
    x_avg = jnp.mean(x, axis=(2, 3))                                      # (B, C)
    h = jax.nn.sigmoid(x_avg @ W1.T + b1)                                 # (B, 256)
    M = (h @ W2.T + b2).reshape(B, L, L)                                  # (B, L, L)
    # At[b, i, o] = A[b, o, i] = sum_{k,l} M[b,k,l] * P[o,l] * Q[k,i]  (hoisted
    # out of the kernel: these K=L matmuls have terrible MXU fill and were being
    # recomputed per TW tile).
    At = jnp.einsum("bkl,ki->bil", M, Q, precision=lax.Precision.HIGHEST)  # (B, C_in, L)
    At = jnp.einsum("bil,ol->bio", At, P, precision=lax.Precision.HIGHEST)  # (B, C_in, C_out)
    At = At.astype(jnp.float32)

    # ---------- glue: rearrange x to the kernel's matmul-friendly layout ----------
    # x: (B, C, T, V) -> (B, KW*C, T*wout): rows tap-major (kw*C + c_in), time in lanes.
    # TODO(synk): fuse this relayout into the upstream producer (or replace it with
    # per-tap strided make_async_copy inside the kernel) to avoid one extra HBM pass
    # over x; here it is a single XLA transpose.
    xk = x[:, :, :, : wout * KW].reshape(B, C, T, wout, KW)
    x_flat = jnp.transpose(xk, (0, 4, 1, 2, 3)).reshape(B, KWC, TW).astype(compute_dtype)
    # static weight (C_out, C_in, 1, KW) -> (KW, C_in, C_out), kept f32 so the
    # per-block waf broadcast-mul runs on the f32 VPU path (v5e has no bf16 VPU).
    w3 = jnp.transpose(weight[:, :, 0, :], (2, 1, 0)).astype(jnp.float32)

    in_isz = jnp.dtype(compute_dtype).itemsize
    out_isz = jnp.dtype(out_dtype).itemsize
    vmem_budget = _vmem_budget()
    bb, tw, TW_pad, vmem_need = _pick_blocks(B, TW, C, KWC, in_isz, out_isz,
                                             in_isz, vmem_budget)
    if TW_pad != TW:
        x_flat = jnp.pad(x_flat, ((0, 0), (0, 0), (0, TW_pad - TW)))
    grid = (B // bb, TW_pad // tw)

    vmem_limit = int(min(vmem_budget,
                         max(vmem_need + 8 * 1024 * 1024, 32 * 1024 * 1024)))

    cost = pl.CostEstimate(
        flops=int(2 * B * C * KWC * TW_pad + 2 * B * KW * C * C),
        transcendentals=0,
        bytes_accessed=int(B * KWC * TW_pad * in_isz          # x stream
                           + B * C * TW_pad * out_isz         # output
                           + B * C * C * 4                    # At
                           + (B // bb) * KW * C * C * 4))     # resident w3 re-reads

    kernel = functools.partial(_dyn_graph_conv_kernel, bb=bb,
                               compute_dtype=compute_dtype)
    out = pl.pallas_call(
        kernel,
        out_shape=jax.ShapeDtypeStruct((B, C, TW_pad), out_dtype),
        grid_spec=pltpu.PrefetchScalarGridSpec(
            num_scalar_prefetch=0,
            grid=grid,
            in_specs=[
                pl.BlockSpec((bb, C, C), lambda bi, ti: (bi, 0, 0)),      # At (per bi)
                pl.BlockSpec((KW, C, C), lambda bi, ti: (0, 0, 0)),       # W3 (resident)
                pl.BlockSpec((bb, KWC, tw), lambda bi, ti: (bi, 0, ti)),  # x stream
            ],
            out_specs=pl.BlockSpec((bb, C, tw), lambda bi, ti: (bi, 0, ti)),
            scratch_shapes=[pltpu.VMEM((bb, KWC, C), compute_dtype)],     # waf cache
        ),
        compiler_params=pltpu.CompilerParams(
            # TW axis must be 'arbitrary': the waf cache is initialized at ti==0
            # and reused across the TW sweep, so ti cannot be megacore-sharded.
            dimension_semantics=("parallel", "arbitrary"),
            vmem_limit_bytes=vmem_limit,
        ),
        cost_estimate=cost,
    )(At, w3, x_flat)

    # PyTorch layout (B, C, T*wout, 1): drop the TW padding, add trailing dim.
    y = out[:, :, :TW][..., None]
    return y, [P, Q]


def reference(x, params):
    """Pure-JAX reference mirroring the PyTorch forward (for validation)."""
    P, Q, weight, W1, b1, W2, b2 = (params[k] for k in
                                    ("P", "Q", "weight", "W1", "b1", "W2", "b2"))
    B, C, T, V = x.shape
    L = P.shape[1]
    x_avg = jnp.mean(x, axis=(2, 3))
    h = jax.nn.sigmoid(x_avg @ W1.T + b1)
    m = (h @ W2.T + b2).reshape(B, L, L)
    e = jnp.einsum("nij,kj->nik", m, P, precision=lax.Precision.HIGHEST)
    a = jnp.einsum("nki,kj->nij", e, Q, precision=lax.Precision.HIGHEST)
    wdyn = jnp.einsum("ijkb,nij->nijkb", weight, a)              # (B, C, C, 1, 17)
    wdyn = wdyn.reshape(B * C, C, 1, KW)
    xr = x.reshape(1, B * C, T, V)
    y = lax.conv_general_dilated(
        xr, wdyn, window_strides=(1, KW), padding="VALID",
        feature_group_count=B,
        dimension_numbers=("NCHW", "OIHW", "NCHW"),
        precision=lax.Precision.HIGHEST)
    return y.reshape(B, C, -1, 1)


if __name__ == "__main__":
    B, C, T, V, L = 4, 8, 16, 17, 4  # hidden_dim = C = 8

    key = jax.random.PRNGKey(0)
    ks = jax.random.split(key, 8)
    x = jax.random.normal(ks[0], (B, C, T, V), jnp.float32)

    params = {
        # P, Q ~ torch.rand -> uniform [0, 1)
        "P": jax.random.uniform(ks[1], (C, L), jnp.float32),
        "Q": jax.random.uniform(ks[2], (L, C), jnp.float32),
        # self.weight is an uninitialized torch.Tensor in __init__: init deterministically
        "weight": jax.random.uniform(ks[3], (C, C, 1, KW), jnp.float32,
                                     minval=-0.1, maxval=0.1),
        # MLP: Linear(C, 256) then Linear(256, L*L), uniform(+-1/sqrt(fan_in)) like torch
        "W1": jax.random.uniform(ks[4], (256, C), jnp.float32,
                                 minval=-1.0 / math.sqrt(C), maxval=1.0 / math.sqrt(C)),
        "b1": jax.random.uniform(ks[5], (256,), jnp.float32,
                                 minval=-1.0 / math.sqrt(C), maxval=1.0 / math.sqrt(C)),
        "W2": jax.random.uniform(ks[6], (L * L, 256), jnp.float32,
                                 minval=-1.0 / 16.0, maxval=1.0 / 16.0),
        "b2": jax.random.uniform(ks[7], (L * L,), jnp.float32,
                                 minval=-1.0 / 16.0, maxval=1.0 / 16.0),
    }

    y_ref = jax.block_until_ready(reference(x, params))
    wout = (V - KW) // KW + 1

    # f32 path: default MXU precision, tolerance vs HIGHEST reference accepted at 5e-3.
    y, (p_out, q_out) = dynamic_graph_conv(x, params)
    y = jax.block_until_ready(y)
    assert y.shape == (B, C, T * wout, 1), y.shape
    assert jnp.allclose(y, y_ref, rtol=5e-3, atol=5e-3), float(jnp.max(jnp.abs(y - y_ref)))

    # bf16-input / f32-accumulation path with bf16 output (v6e / v7x MXU fast path).
    y_bf, _ = dynamic_graph_conv(x, params, compute_dtype=jnp.bfloat16,
                                 out_dtype=jnp.bfloat16)
    y_bf = jax.block_until_ready(y_bf)
    rel = float(jnp.linalg.norm(y_bf.astype(jnp.float32) - y_ref) / jnp.linalg.norm(y_ref))
    assert rel < 5e-2, rel

    print("KERNEL_OK")
</pallas_src>

<mosaic_0001>
module attributes {stable_mosaic.version = 11 : i64} {
  func.func @_dyn_graph_conv_kernel(%arg0: i32, %arg1: i32, %arg2: memref<2x8x8xf32, #tpu.memory_space<vmem>>, %arg3: memref<17x8x8xf32, #tpu.memory_space<vmem>>, %arg4: memref<2x136x16xf32, #tpu.memory_space<vmem>>, %arg5: memref<2x8x16xf32, #tpu.memory_space<vmem>>, %arg6: memref<2x136x8xf32, #tpu.memory_space<vmem>>) attributes {dimension_semantics = [#tpu.dimension_semantics<parallel>, #tpu.dimension_semantics<arbitrary>], iteration_bounds = array<i64: 2, 1>, scalar_prefetch = 0 : i64, scratch_operands = 1 : i64, tpu.core_type = #tpu.core_type<tc>, window_params = [{transform_indices = @transform_0, window_bounds = array<i64: 2, 8, 8>}, {pipeline_mode = #tpu.pipeline_mode<synchronous>, transform_indices = @transform_1, window_bounds = array<i64: 17, 8, 8>}, {transform_indices = @transform_2, window_bounds = array<i64: 2, 136, 16>}, {transform_indices = @transform_3, window_bounds = array<i64: 2, 8, 16>}]} {
    %c0_i32 = arith.constant 0 : i32
    %0 = arith.cmpi eq, %arg1, %c0_i32 : i32
    %1 = arith.extui %0 : i1 to i32
    %c0_i32_0 = arith.constant 0 : i32
    %2 = arith.cmpi ne, %1, %c0_i32_0 : i32
    scf.if %2 {
      %c0_14 = arith.constant 0 : index
      %c0_15 = arith.constant 0 : index
      %c0_16 = arith.constant 0 : index
      %25 = vector.load %arg3[%c0_14, %c0_15, %c0_16] : memref<17x8x8xf32, #tpu.memory_space<vmem>>, vector<17x8x8xf32>
      %c0_i32_17 = arith.constant 0 : i32
      %26 = arith.index_cast %c0_i32_17 : i32 to index
      %c0_18 = arith.constant 0 : index
      %c0_19 = arith.constant 0 : index
      %27 = vector.load %arg2[%26, %c0_18, %c0_19] : memref<2x8x8xf32, #tpu.memory_space<vmem>>, vector<1x8x8xf32>
      %28 = vector.shape_cast %27 : vector<1x8x8xf32> to vector<8x8xf32>
      %29 = vector.shape_cast %28 : vector<8x8xf32> to vector<1x8x8xf32>
      %30 = vector.broadcast %29 : vector<1x8x8xf32> to vector<17x8x8xf32>
      %31 = arith.mulf %25, %30 : vector<17x8x8xf32>
      %32 = vector.shape_cast %31 : vector<17x8x8xf32> to vector<136x8xf32>
      %33 = arith.index_cast %c0_i32_17 : i32 to index
      %c0_20 = arith.constant 0 : index
      %c0_21 = arith.constant 0 : index
      %34 = vector.load %arg6[%33, %c0_20, %c0_21] : memref<2x136x8xf32, #tpu.memory_space<vmem>>, vector<1x136x8xf32>
      %35 = vector.shape_cast %34 : vector<1x136x8xf32> to vector<136x8xf32>
      %36 = vector.shape_cast %32 : vector<136x8xf32> to vector<1x136x8xf32>
      tpu.vector_store %arg6[%33, %c0_20, %c0_21], %36 {strides = array<i32>} : memref<2x136x8xf32, #tpu.memory_space<vmem>>, vector<1x136x8xf32>,
      %c1_i32_22 = arith.constant 1 : i32
      %37 = arith.index_cast %c1_i32_22 : i32 to index
      %c0_23 = arith.constant 0 : index
      %c0_24 = arith.constant 0 : index
      %38 = vector.load %arg2[%37, %c0_23, %c0_24] : memref<2x8x8xf32, #tpu.memory_space<vmem>>, vector<1x8x8xf32>
      %39 = vector.shape_cast %38 : vector<1x8x8xf32> to vector<8x8xf32>
      %40 = vector.shape_cast %39 : vector<8x8xf32> to vector<1x8x8xf32>
      %41 = vector.broadcast %40 : vector<1x8x8xf32> to vector<17x8x8xf32>
      %42 = arith.mulf %25, %41 : vector<17x8x8xf32>
      %43 = vector.shape_cast %42 : vector<17x8x8xf32> to vector<136x8xf32>
      %44 = arith.index_cast %c1_i32_22 : i32 to index
      %c0_25 = arith.constant 0 : index
      %c0_26 = arith.constant 0 : index
      %45 = vector.load %arg6[%44, %c0_25, %c0_26] : memref<2x136x8xf32, #tpu.memory_space<vmem>>, vector<1x136x8xf32>
      %46 = vector.shape_cast %45 : vector<1x136x8xf32> to vector<136x8xf32>
      %47 = vector.shape_cast %43 : vector<136x8xf32> to vector<1x136x8xf32>
      tpu.vector_store %arg6[%44, %c0_25, %c0_26], %47 {strides = array<i32>} : memref<2x136x8xf32, #tpu.memory_space<vmem>>, vector<1x136x8xf32>,
      %c2_i32_27 = arith.constant 2 : i32
    } else {
    }
    %c0_i32_1 = arith.constant 0 : i32
    %3 = arith.index_cast %c0_i32_1 : i32 to index
    %c0 = arith.constant 0 : index
    %c0_2 = arith.constant 0 : index
    %4 = vector.load %arg6[%3, %c0, %c0_2] : memref<2x136x8xf32, #tpu.memory_space<vmem>>, vector<1x136x8xf32>
    %5 = vector.shape_cast %4 : vector<1x136x8xf32> to vector<136x8xf32>
    %6 = arith.index_cast %c0_i32_1 : i32 to index
    %c0_3 = arith.constant 0 : index
    %c0_4 = arith.constant 0 : index
    %7 = vector.load %arg4[%6, %c0_3, %c0_4] : memref<2x136x16xf32, #tpu.memory_space<vmem>>, vector<1x136x16xf32>
    %8 = vector.shape_cast %7 : vector<1x136x16xf32> to vector<136x16xf32>
    %cst = arith.constant dense<0.000000e+00> : vector<8x16xf32>
    %9 = tpu.matmul %5, %8, %cst {dimension_numbers = #tpu.dot_dimension_numbers<[0], [0], [1], [1], [0, 1, 1, 1], [], []>} : vector<136x8xf32>, vector<136x16xf32>, vector<8x16xf32> -> vector<8x16xf32>
    %10 = arith.index_cast %c0_i32_1 : i32 to index
    %c0_5 = arith.constant 0 : index
    %c0_6 = arith.constant 0 : index
    %11 = vector.load %arg5[%10, %c0_5, %c0_6] : memref<2x8x16xf32, #tpu.memory_space<vmem>>, vector<1x8x16xf32>
    %12 = vector.shape_cast %11 : vector<1x8x16xf32> to vector<8x16xf32>
    %13 = vector.shape_cast %9 : vector<8x16xf32> to vector<1x8x16xf32>
    tpu.vector_store %arg5[%10, %c0_5, %c0_6], %13 {strides = array<i32>} : memref<2x8x16xf32, #tpu.memory_space<vmem>>, vector<1x8x16xf32>,
    %c1_i32 = arith.constant 1 : i32
    %14 = arith.index_cast %c1_i32 : i32 to index
    %c0_7 = arith.constant 0 : index
    %c0_8 = arith.constant 0 : index
    %15 = vector.load %arg6[%14, %c0_7, %c0_8] : memref<2x136x8xf32, #tpu.memory_space<vmem>>, vector<1x136x8xf32>
    %16 = vector.shape_cast %15 : vector<1x136x8xf32> to vector<136x8xf32>
    %17 = arith.index_cast %c1_i32 : i32 to index
    %c0_9 = arith.constant 0 : index
    %c0_10 = arith.constant 0 : index
    %18 = vector.load %arg4[%17, %c0_9, %c0_10] : memref<2x136x16xf32, #tpu.memory_space<vmem>>, vector<1x136x16xf32>
    %19 = vector.shape_cast %18 : vector<1x136x16xf32> to vector<136x16xf32>
    %cst_11 = arith.constant dense<0.000000e+00> : vector<8x16xf32>
    %20 = tpu.matmul %16, %19, %cst_11 {dimension_numbers = #tpu.dot_dimension_numbers<[0], [0], [1], [1], [0, 1, 1, 1], [], []>} : vector<136x8xf32>, vector<136x16xf32>, vector<8x16xf32> -> vector<8x16xf32>
    %21 = arith.index_cast %c1_i32 : i32 to index
    %c0_12 = arith.constant 0 : index
    %c0_13 = arith.constant 0 : index
    %22 = vector.load %arg5[%21, %c0_12, %c0_13] : memref<2x8x16xf32, #tpu.memory_space<vmem>>, vector<1x8x16xf32>
    %23 = vector.shape_cast %22 : vector<1x8x16xf32> to vector<8x16xf32>
    %24 = vector.shape_cast %20 : vector<8x16xf32> to vector<1x8x16xf32>
    tpu.vector_store %arg5[%21, %c0_12, %c0_13], %24 {strides = array<i32>} : memref<2x8x16xf32, #tpu.memory_space<vmem>>, vector<1x8x16xf32>,
    %c2_i32 = arith.constant 2 : i32
    return
  }
  func.func @transform_0(%arg0: i32, %arg1: i32) -> (i32, i32, i32) {
    %c0_i32 = arith.constant 0 : i32
    %c0_i32_0 = arith.constant 0 : i32
    %c0_i32_1 = arith.constant 0 : i32
    return %arg0, %c0_i32, %c0_i32_0 : i32, i32, i32
  }
  func.func @transform_1(%arg0: i32, %arg1: i32) -> (i32, i32, i32) {
    %c0_i32 = arith.constant 0 : i32
    %c0_i32_0 = arith.constant 0 : i32
    %c0_i32_1 = arith.constant 0 : i32
    %c0_i32_2 = arith.constant 0 : i32
    return %c0_i32, %c0_i32_0, %c0_i32_1 : i32, i32, i32
  }
  func.func @transform_2(%arg0: i32, %arg1: i32) -> (i32, i32, i32) {
    %c0_i32 = arith.constant 0 : i32
    %c0_i32_0 = arith.constant 0 : i32
    return %arg0, %c0_i32, %arg1 : i32, i32, i32
  }
  func.func @transform_3(%arg0: i32, %arg1: i32) -> (i32, i32, i32) {
    %c0_i32 = arith.constant 0 : i32
    %c0_i32_0 = arith.constant 0 : i32
    return %arg0, %c0_i32, %arg1 : i32, i32, i32
  }
}

</mosaic_0001>

<llo_original>
// kernel: tpu_custom_call.1
$region0: #{tpu_custom_call.1}
  #allocation0 [shape = 'u32[]', space=smem, size = 0x4, offset = 0x4, fixed_abs, tag = 'smem constant byte address 0x4 - core index']
  #allocation1 [shape = 'u32[72,128]{1,0:T(1,128)}', space=vmem, size = 0x9000, scoped, tag = 'internal scratch']
  #allocation2 [shape = 'f32[2,136,8]{2,1,0:T(8,128)}', space=vmem, size = 0x22000, scoped, tag = 'scratch operand']
  %s0 = inlined_call_operand.vmem [shape: f32[4,8,8], index: 0, kind: input, shape index: {}]
  %s1 = inlined_call_operand.vmem [shape: f32[17,8,8], index: 1, kind: input, shape index: {}]
  %s2 = inlined_call_operand.vmem [shape: f32[4,136,16], index: 2, kind: input, shape index: {}]
  %s3 = inlined_call_operand.hbm [shape: f32[4,8,16], index: 3, kind: output, shape index: {}]
  %s4 = sld [smem:[#allocation0]]
  $region49: #{tpu_custom_call.1} parent=0
    _
  %s6 = ssub.s32 1, %s4
  %s7 = scalar_select 0, %s6, %s4
  $region1: #{tpu_custom_call.1} parent=0
    #allocation3 [shape = 'u8[16384]{0}', space=vmem, size = 0x4000, scoped, tag = 'output window, operand 0']
    #allocation4 [shape = 's32[2]{0}', space=sflag, size = 0x8, scoped, tag = 'scoped memory for tpu_custom_call.1']
    %8 = vsyncpa [#allocation4], 0
    %s9 = scalar_lea.sflag [#allocation4], 1
    %10 = vsyncpa %s9, 0
    loop: start=0, step=1, limit=4
    $region2: #{tpu_custom_call.1} parent=1 // loop_pre_header
      _
    $region3: #{tpu_custom_call.1} parent=1 // loop_header
      %s12 = sphi 0, %s16
      %p13 = scmp.ge.s32.totalorder %s12, 4
      %s19 = sphi 0, %s31
      %s20 = sphi 0, %s27
      %s21 = sphi 0, %s19
      %s22 = sphi 0, %s20
      %s23 = sphi 0, %s21
      %s24 = sphi 0, %s22
      %s34 = sphi 0, %s36
      %s37 = sphi 0, %s34
      %s38 = sphi 0, %s37
      %s54 = sphi 0, %s38
      %s58 = sphi 0, %s58
      %s60 = sphi 0, %s58
      %s61 = sphi 0, %s60
      %s75 = sphi 0, %s61
      %s83 = sphi 0, %s85
      %s86 = sphi 0, %s83
      %s87 = sphi 0, %s86
      %s103 = sphi 0, %s87
      %s111 = sphi 0, %s113
      %s114 = sphi 0, %s111
      %s115 = sphi 0, %s114
      %s131 = sphi 0, %s115
    $region4: #{tpu_custom_call.1} parent=1 // loop_header_branch
      %15 = sbr.rel (%p13) target = $region8
    $region5: #{tpu_custom_call.1} parent=1 // loop_body
      %s17 = ssub.s32 %s12, 1
      %s18 = ssub.s32 %s12, 2
      %s25 = sadd.s32 1, %s20
      %p26 = scmp.ge.s32.totalorder %s25, 1
      %s27 = scalar_select %p26, 0, %s25
      %s28 = sadd.s32 1, %s19
      %s29 = scalar_select %p26, %s28, %s19
      %p30 = scmp.ge.s32.totalorder %s29, 2
      %s31 = scalar_select %p30, 0, %s29
      %s32 = ssub.s32 %s19, %s31
      %p33 = scmp.eq.s32.totalorder %s32, 0
      %s35 = sadd.s32 %s34, 1
      %s36 = scalar_select %p33, %s34, %s35
      %p39 = pneg %p33
      %p40 = scmp.eq.s32.totalorder %s12, 1
      %p41 = por %p39, %p40
      %p42 = scmp.ne.s32.totalorder %s34, %s37
      %p43 = scmp.eq.s32.totalorder %s12, 0
      %p44 = por %p42, %p43
      %p45 = scmp.ne.s32.totalorder %s34, %s37
      %p46 = scmp.eq.s32.totalorder %s17, 1
      %p47 = por %p45, %p46
      %p48 = scmp.ne.s32.totalorder %s37, %s38
      %p49 = scmp.eq.s32.totalorder %s17, 0
      %p50 = por %p48, %p49
      %p51 = scmp.ne.s32.totalorder %s37, %s38
      %p52 = scmp.eq.s32.totalorder %s18, 1
      %p53 = por %p51, %p52
      %p55 = scmp.ne.s32.totalorder %s38, %s54
      %p56 = scmp.eq.s32.totalorder %s18, 0
      %p57 = por %p55, %p56
      %s59 = sadd.s32 %s58, 1
      %p62 = scmp.eq.s32.totalorder %s12, 1
      %p63 = scmp.ne.s32.totalorder %s58, %s60
      %p64 = scmp.eq.s32.totalorder %s12, 0
      %p65 = por %p63, %p64
      %p66 = scmp.ne.s32.totalorder %s58, %s60
      %p67 = scmp.eq.s32.totalorder %s17, 1
      %p68 = por %p66, %p67
      %p69 = scmp.ne.s32.totalorder %s60, %s61
      %p70 = scmp.eq.s32.totalorder %s17, 0
      %p71 = por %p69, %p70
      %p72 = scmp.ne.s32.totalorder %s60, %s61
      %p73 = scmp.eq.s32.totalorder %s18, 1
      %p74 = por %p72, %p73
      %p76 = scmp.ne.s32.totalorder %s61, %s75
      %p77 = scmp.eq.s32.totalorder %s18, 0
      %p78 = por %p76, %p77
      %s79 = ssub.s32 %s19, %s31
      %s80 = ssub.s32 %s20, %s27
      %s81 = sor.u32 %s79, %s80
      %p82 = scmp.eq.s32.totalorder %s81, 0
      %s84 = sadd.s32 %s83, 1
      %s85 = scalar_select %p82, %s83, %s84
      %p88 = pneg %p82
      %p89 = scmp.eq.s32.totalorder %s12, 1
      %p90 = por %p88, %p89
      %p91 = scmp.ne.s32.totalorder %s83, %s86
      %p92 = scmp.eq.s32.totalorder %s12, 0
      %p93 = por %p91, %p92
      %p94 = scmp.ne.s32.totalorder %s83, %s86
      %p95 = scmp.eq.s32.totalorder %s17, 1
      %p96 = por %p94, %p95
      %p97 = scmp.ne.s32.totalorder %s86, %s87
      %p98 = scmp.eq.s32.totalorder %s17, 0
      %p99 = por %p97, %p98
      %p100 = scmp.ne.s32.totalorder %s86, %s87
      %p101 = scmp.eq.s32.totalorder %s18, 1
      %p102 = por %p100, %p101
      %p104 = scmp.ne.s32.totalorder %s87, %s103
      %p105 = scmp.eq.s32.totalorder %s18, 0
      %p106 = por %p104, %p105
      %s107 = ssub.s32 %s19, %s31
      %s108 = ssub.s32 %s20, %s27
      %s109 = sor.u32 %s107, %s108
      %p110 = scmp.eq.s32.totalorder %s109, 0
      %s112 = sadd.s32 %s111, 1
      %s113 = scalar_select %p110, %s111, %s112
      %p116 = pneg %p110
      %p117 = scmp.eq.s32.totalorder %s12, 1
      %p118 = por %p116, %p117
      %p119 = scmp.ne.s32.totalorder %s111, %s114
      %p120 = scmp.eq.s32.totalorder %s12, 0
      %p121 = por %p119, %p120
      %p122 = scmp.ne.s32.totalorder %s111, %s114
      %p123 = scmp.eq.s32.totalorder %s17, 1
      %p124 = por %p122, %p123
      %p125 = scmp.ne.s32.totalorder %s114, %s115
      %p126 = scmp.eq.s32.totalorder %s17, 0
      %p127 = por %p125, %p126
      %p128 = scmp.ne.s32.totalorder %s114, %s115
      %p129 = scmp.eq.s32.totalorder %s18, 1
      %p130 = por %p128, %p129
      %p132 = scmp.ne.s32.totalorder %s115, %s131
      %p133 = scmp.eq.s32.totalorder %s18, 0
      %p134 = por %p132, %p133
      %p135 = scmp.le.s32.totalorder 1, %s12
      %p136 = scmp.lt.s32.totalorder %s12, 3
      %p137 = pnand %p135, %p136
      %p138 = pneg %p137
      // Predicated region
      $region9: #{tpu_custom_call.1} parent=5 // pred_check
        _
      $region10: #{tpu_custom_call.1} parent=5 // pred_check_branch
        %140 = sbr.rel (%p137) target = $region12
      $region11: #{tpu_custom_call.1} parent=5 // pred_region
        %s141 = ssub.s32 %s12, 1
        // Predicated region
        $region13: #{tpu_custom_call.1} parent=11 // pred_check
          %p142 = pneg %p71
        $region14: #{tpu_custom_call.1} parent=11 // pred_check_branch
          %144 = sbr.rel (%p142) target = $region16
        $region15: #{tpu_custom_call.1} parent=11 // pred_region
          _
        $region16: #{tpu_custom_call.1} parent=11 // pred_fallthru
          _
      $region12: #{tpu_custom_call.1} parent=5 // pred_fallthru
        _
      %p145 = scmp.lt.s32.totalorder %s12, 2
      // Predicated region
      $region17: #{tpu_custom_call.1} parent=5 // pred_check
        %p146 = pneg %p145
      $region18: #{tpu_custom_call.1} parent=5 // pred_check_branch
        %148 = sbr.rel (%p146) target = $region20
      $region19: #{tpu_custom_call.1} parent=5 // pred_region
        // Predicated region
        $region21: #{tpu_custom_call.1} parent=19 // pred_check
          %p149 = pneg %p44
        $region22: #{tpu_custom_call.1} parent=19 // pred_check_branch
          %151 = sbr.rel (%p149) target = $region24
        $region23: #{tpu_custom_call.1} parent=19 // pred_region
          %s152 = smul.u32 2, %s19
          %p153 = scmp.lt.s32.totalorder %s152, 3
          %s154 = scalar_select %p153, %s152, 3
          %s155 = smul.addr %s154, 8
          %s156 = scalar_lea.vmem %s0, %s155
          %s157 = smul.u32 2, %s19
        $region24: #{tpu_custom_call.1} parent=19 // pred_fallthru
          _
        // Predicated region
        $region25: #{tpu_custom_call.1} parent=19 // pred_check
          %p158 = pneg %p93
        $region26: #{tpu_custom_call.1} parent=19 // pred_check_branch
          %160 = sbr.rel (%p158) target = $region28
        $region27: #{tpu_custom_call.1} parent=19 // pred_region
          %s161 = smul.u32 2, %s19
          %p162 = scmp.lt.s32.totalorder %s161, 3
          %s163 = scalar_select %p162, %s161, 3
          %p164 = scmp.lt.s32.totalorder %s20, 0
          %s165 = scalar_select %p164, %s20, 0
          %s166 = smul.addr %s163, 17
          %s167 = sadd.s32 %s165, %s166
          %s168 = smul.addr %s167, 8
          %s169 = scalar_lea.vmem %s2, %s168
          %s170 = smul.u32 2, %s19
        $region28: #{tpu_custom_call.1} parent=19 // pred_fallthru
          _
      $region20: #{tpu_custom_call.1} parent=5 // pred_fallthru
        _
      %p171 = scmp.le.s32.totalorder 1, %s12
      %p172 = scmp.lt.s32.totalorder %s12, 3
      %p173 = pnand %p171, %p172
      %p174 = pneg %p173
      // Predicated region
      $region29: #{tpu_custom_call.1} parent=5 // pred_check
        _
      $region30: #{tpu_custom_call.1} parent=5 // pred_check_branch
        %176 = sbr.rel (%p173) target = $region32
      $region31: #{tpu_custom_call.1} parent=5 // pred_region
        %s177 = ssub.s32 %s12, 1
        %s178 = smul.u32 2, %s21
        %p179 = scmp.lt.s32.totalorder %s178, 3
        %s180 = scalar_select %p179, %s178, 3
        %s181 = smul.addr %s180, 8
        %s182 = scalar_lea.vmem %s0, %s181
        %p183 = pneg %p50
        %p184 = pneg %p47
        %p185 = pneg %p71
        %p186 = pneg %p68
        %s187 = smul.u32 2, %s21
        %p188 = scmp.lt.s32.totalorder %s187, 3
        %s189 = scalar_select %p188, %s187, 3
        %p190 = scmp.lt.s32.totalorder %s22, 0
        %s191 = scalar_select %p190, %s22, 0
        %s192 = smul.addr %s189, 17
        %s193 = sadd.s32 %s191, %s192
        %s194 = smul.addr %s193, 8
        %s195 = scalar_lea.vmem %s2, %s194
        %p196 = pneg %p99
        %p197 = pneg %p96
        %p198 = pneg %p127
        %p199 = pneg %p124
        %s200 = sand.u32 %s114, 1
        %s201 = scalar_lea.sflag [#allocation4], %s200
        %s202 = sand.u32 %s114, 1
        %s203 = smul.addr %s202, 16
        %s204 = scalar_lea.vmem [#allocation3], %s203
        %s205 = smul.u32 2, %s21
        %p206 = scmp.lt.s32.totalorder %s205, 3
        %s207 = scalar_select %p206, %s205, 3
        %s208 = smul.addr %s207, 8
        %s209 = scalar_lea.vmem %s0, %s208
        %s210 = smul.u32 2, %s21
        %s211 = smul.u32 2, %s21
        %p212 = scmp.lt.s32.totalorder %s211, 3
        %s213 = scalar_select %p212, %s211, 3
        %p214 = scmp.lt.s32.totalorder %s22, 0
        %s215 = scalar_select %p214, %s22, 0
        %s216 = smul.addr %s213, 17
        %s217 = sadd.s32 %s215, %s216
        %s218 = smul.addr %s217, 8
        %s219 = scalar_lea.vmem %s2, %s218
        %s220 = smul.u32 2, %s21
        %s221 = smul.u32 2, %s21
        %p222 = scmp.eq.s32.totalorder %s22, 0
        // Predicated region
        $region33: #{tpu_custom_call.1} parent=31 // pred_check
          %p223 = pneg %p222
        $region34: #{tpu_custom_call.1} parent=31 // pred_check_branch
          %225 = sbr.rel (%p223) target = $region36
        $region35: #{tpu_custom_call.1} parent=31 // pred_region
          %v226 = vld [vmem:[%s1] sm:$0xff]
          %v227 = vld [vmem:[%s1 + $0x8] sm:$0xff]
          %v228 = vld [vmem:[%s1 + $0x10] sm:$0xff]
          %v229 = vld [vmem:[%s1 + $0x18] sm:$0xff]
          %v230 = vld [vmem:[%s1 + $0x20] sm:$0xff]
          %v231 = vld [vmem:[%s1 + $0x28] sm:$0xff]
          %v232 = vld [vmem:[%s1 + $0x30] sm:$0xff]
          %v233 = vld [vmem:[%s1 + $0x38] sm:$0xff]
          %v234 = vld [vmem:[%s1 + $0x40] sm:$0xff]
          %v235 = vld [vmem:[%s1 + $0x48] sm:$0xff]
          %v236 = vld [vmem:[%s1 + $0x50] sm:$0xff]
          %v237 = vld [vmem:[%s1 + $0x58] sm:$0xff]
          %v238 = vld [vmem:[%s1 + $0x60] sm:$0xff]
          %v239 = vld [vmem:[%s1 + $0x68] sm:$0xff]
          %v240 = vld [vmem:[%s1 + $0x70] sm:$0xff]
          %v241 = vld [vmem:[%s1 + $0x78] sm:$0xff]
          %v242 = vld [vmem:[%s1 + $0x80] sm:$0xff]
          %v243 = vld [vmem:[%s209] sm:$0xff]
          %v244 = vmul.f32 %v226, %v243
          %v245 = vmul.f32 %v227, %v243
          %v246 = vmul.f32 %v228, %v243
          %v247 = vmul.f32 %v229, %v243
          %v248 = vmul.f32 %v230, %v243
          %v249 = vmul.f32 %v231, %v243
          %v250 = vmul.f32 %v232, %v243
          %v251 = vmul.f32 %v233, %v243
          %v252 = vmul.f32 %v234, %v243
          %v253 = vmul.f32 %v235, %v243
          %v254 = vmul.f32 %v236, %v243
          %v255 = vmul.f32 %v237, %v243
          %v256 = vmul.f32 %v238, %v243
          %v257 = vmul.f32 %v239, %v243
          %v258 = vmul.f32 %v240, %v243
          %v259 = vmul.f32 %v241, %v243
          %v260 = vmul.f32 %v242, %v243
          %vm261 = vcmask 64512
          %262 = vst.msk [vmem:[#allocation2] sm:$0xff] %vm261, %v244
          %263 = vst.msk [vmem:[#allocation2 + $0x8] sm:$0xff] %vm261, %v245
          %264 = vst.msk [vmem:[#allocation2 + $0x10] sm:$0xff] %vm261, %v246
          %265 = vst.msk [vmem:[#allocation2 + $0x18] sm:$0xff] %vm261, %v247
          %266 = vst.msk [vmem:[#allocation2 + $0x20] sm:$0xff] %vm261, %v248
          %267 = vst.msk [vmem:[#allocation2 + $0x28] sm:$0xff] %vm261, %v249
          %268 = vst.msk [vmem:[#allocation2 + $0x30] sm:$0xff] %vm261, %v250
          %269 = vst.msk [vmem:[#allocation2 + $0x38] sm:$0xff] %vm261, %v251
          %270 = vst.msk [vmem:[#allocation2 + $0x40] sm:$0xff] %vm261, %v252
          %271 = vst.msk [vmem:[#allocation2 + $0x48] sm:$0xff] %vm261, %v253
          %272 = vst.msk [vmem:[#allocation2 + $0x50] sm:$0xff] %vm261, %v254
          %273 = vst.msk [vmem:[#allocation2 + $0x58] sm:$0xff] %vm261, %v255
          %274 = vst.msk [vmem:[#allocation2 + $0x60] sm:$0xff] %vm261, %v256
          %275 = vst.msk [vmem:[#allocation2 + $0x68] sm:$0xff] %vm261, %v257
          %276 = vst.msk [vmem:[#allocation2 + $0x70] sm:$0xff] %vm261, %v258
          %277 = vst.msk [vmem:[#allocation2 + $0x78] sm:$0xff] %vm261, %v259
          %278 = vst.msk [vmem:[#allocation2 + $0x80] sm:$0xff] %vm261, %v260
          %s279 = scalar_lea.vmem %s209, 8
          %v280 = vld [vmem:[%s279] sm:$0xff]
          %v281 = vmul.f32 %v226, %v280
          %v282 = vmul.f32 %v227, %v280
          %v283 = vmul.f32 %v228, %v280
          %v284 = vmul.f32 %v229, %v280
          %v285 = vmul.f32 %v230, %v280
          %v286 = vmul.f32 %v231, %v280
          %v287 = vmul.f32 %v232, %v280
          %v288 = vmul.f32 %v233, %v280
          %v289 = vmul.f32 %v234, %v280
          %v290 = vmul.f32 %v235, %v280
          %v291 = vmul.f32 %v236, %v280
          %v292 = vmul.f32 %v237, %v280
          %v293 = vmul.f32 %v238, %v280
          %v294 = vmul.f32 %v239, %v280
          %v295 = vmul.f32 %v240, %v280
          %v296 = vmul.f32 %v241, %v280
          %v297 = vmul.f32 %v242, %v280
          %s298 = scalar_lea.vmem [#allocation2], 136
          %299 = vst.msk [vmem:[%s298] sm:$0xff] %vm261, %v281
          %300 = vst.msk [vmem:[%s298 + $0x8] sm:$0xff] %vm261, %v282
          %301 = vst.msk [vmem:[%s298 + $0x10] sm:$0xff] %vm261, %v283
          %302 = vst.msk [vmem:[%s298 + $0x18] sm:$0xff] %vm261, %v284
          %303 = vst.msk [vmem:[%s298 + $0x20] sm:$0xff] %vm261, %v285
          %304 = vst.msk [vmem:[%s298 + $0x28] sm:$0xff] %vm261, %v286
          %305 = vst.msk [vmem:[%s298 + $0x30] sm:$0xff] %vm261, %v287
          %306 = vst.msk [vmem:[%s298 + $0x38] sm:$0xff] %vm261, %v288
          %307 = vst.msk [vmem:[%s298 + $0x40] sm:$0xff] %vm261, %v289
          %308 = vst.msk [vmem:[%s298 + $0x48] sm:$0xff] %vm261, %v290
          %309 = vst.msk [vmem:[%s298 + $0x50] sm:$0xff] %vm261, %v291
          %310 = vst.msk [vmem:[%s298 + $0x58] sm:$0xff] %vm261, %v292
          %311 = vst.msk [vmem:[%s298 + $0x60] sm:$0xff] %vm261, %v293
          %312 = vst.msk [vmem:[%s298 + $0x68] sm:$0xff] %vm261, %v294
          %313 = vst.msk [vmem:[%s298 + $0x70] sm:$0xff] %vm261, %v295
          %314 = vst.msk [vmem:[%s298 + $0x78] sm:$0xff] %vm261, %v296
          %315 = vst.msk [vmem:[%s298 + $0x80] sm:$0xff] %vm261, %v297
        $region36: #{tpu_custom_call.1} parent=31 // pred_fallthru
          _
        %v316 = vld [vmem:[#allocation2] sm:$0xff]
        %v317 = vld [vmem:[#allocation2 + $0x8] sm:$0xff]
        %v318 = vld [vmem:[#allocation2 + $0x10] sm:$0xff]
        %v319 = vld [vmem:[#allocation2 + $0x18] sm:$0xff]
        %v320 = vld [vmem:[#allocation2 + $0x20] sm:$0xff]
        %v321 = vld [vmem:[#allocation2 + $0x28] sm:$0xff]
        %v322 = vld [vmem:[#allocation2 + $0x30] sm:$0xff]
        %v323 = vld [vmem:[#allocation2 + $0x38] sm:$0xff]
        %v324 = vld [vmem:[#allocation2 + $0x40] sm:$0xff]
        %v325 = vld [vmem:[#allocation2 + $0x48] sm:$0xff]
        %v326 = vld [vmem:[#allocation2 + $0x50] sm:$0xff]
        %v327 = vld [vmem:[#allocation2 + $0x58] sm:$0xff]
        %v328 = vld [vmem:[#allocation2 + $0x60] sm:$0xff]
        %v329 = vld [vmem:[#allocation2 + $0x68] sm:$0xff]
        %v330 = vld [vmem:[#allocation2 + $0x70] sm:$0xff]
        %v331 = vld [vmem:[#allocation2 + $0x78] sm:$0xff]
        %v332 = vld [vmem:[#allocation2 + $0x80] sm:$0xff]
        %v333 = vld [vmem:[%s219] sm:$0xff]
        %v334 = vld [vmem:[%s219 + $0x8] sm:$0xff]
        %v335 = vld [vmem:[%s219 + $0x10] sm:$0xff]
        %v336 = vld [vmem:[%s219 + $0x18] sm:$0xff]
        %v337 = vld [vmem:[%s219 + $0x20] sm:$0xff]
        %v338 = vld [vmem:[%s219 + $0x28] sm:$0xff]
        %v339 = vld [vmem:[%s219 + $0x30] sm:$0xff]
        %v340 = vld [vmem:[%s219 + $0x38] sm:$0xff]
        %v341 = vld [vmem:[%s219 + $0x40] sm:$0xff]
        %v342 = vld [vmem:[%s219 + $0x48] sm:$0xff]
        %v343 = vld [vmem:[%s219 + $0x50] sm:$0xff]
        %v344 = vld [vmem:[%s219 + $0x58] sm:$0xff]
        %v345 = vld [vmem:[%s219 + $0x60] sm:$0xff]
        %v346 = vld [vmem:[%s219 + $0x68] sm:$0xff]
        %v347 = vld [vmem:[%s219 + $0x70] sm:$0xff]
        %v348 = vld [vmem:[%s219 + $0x78] sm:$0xff]
        %v349 = vld [vmem:[%s219 + $0x80] sm:$0xff]
        %350 = vxpose.xlu0.b32.start [1/16] %v316, 128
        %351 = vxpose.xlu0.b32.cont [2/16] %v317, 128
        %352 = vxpose.xlu0.b32.cont [3/16] %v318, 128
        %353 = vxpose.xlu0.b32.cont [4/16] %v319, 128
        %354 = vxpose.xlu0.b32.cont [5/16] %v320, 128
        %355 = vxpose.xlu0.b32.cont [6/16] %v321, 128
        %356 = vxpose.xlu0.b32.cont [7/16] %v322, 128
        %357 = vxpose.xlu0.b32.cont [8/16] %v323, 128
        %358 = vxpose.xlu0.b32.cont [9/16] %v324, 128
        %359 = vxpose.xlu0.b32.cont [10/16] %v325, 128
        %360 = vxpose.xlu0.b32.cont [11/16] %v326, 128
        %361 = vxpose.xlu0.b32.cont [12/16] %v327, 128
        %362 = vxpose.xlu0.b32.cont [13/16] %v328, 128
        %363 = vxpose.xlu0.b32.cont [14/16] %v329, 128
        %364 = vxpose.xlu0.b32.cont [15/16] %v330, 128
        %365 = vxpose.xlu0.b32.end [16/16] %v331, 128
        %v366 = vpop.trf.xlu0
        %v367 = vpop.trf.xlu0
        %v368 = vpop.trf.xlu0
        %v369 = vpop.trf.xlu0
        %v370 = vpop.trf.xlu0
        %v371 = vpop.trf.xlu0
        %v372 = vpop.trf.xlu0
        %v373 = vpop.trf.xlu0
        %v374 = vpop.trf.xlu0
        %v375 = vpop.trf.xlu0
        %v376 = vpop.trf.xlu0
        %v377 = vpop.trf.xlu0
        %v378 = vpop.trf.xlu0
        %v379 = vpop.trf.xlu0
        %v380 = vpop.trf.xlu0
        %v381 = vpop.trf.xlu0
        %382 = vxpose.xlu0.b32.start [1/16] %v332, 128
        %383 = vxpose.xlu0.b32.cont [2/16] 0.0, 128
        %384 = vxpose.xlu0.b32.cont [3/16] 0.0, 128
        %385 = vxpose.xlu0.b32.cont [4/16] 0.0, 128
        %386 = vxpose.xlu0.b32.cont [5/16] 0.0, 128
        %387 = vxpose.xlu0.b32.cont [6/16] 0.0, 128
        %388 = vxpose.xlu0.b32.cont [7/16] 0.0, 128
        %389 = vxpose.xlu0.b32.cont [8/16] 0.0, 128
        %390 = vxpose.xlu0.b32.cont [9/16] 0.0, 128
        %391 = vxpose.xlu0.b32.cont [10/16] 0.0, 128
        %392 = vxpose.xlu0.b32.cont [11/16] 0.0, 128
        %393 = vxpose.xlu0.b32.cont [12/16] 0.0, 128
        %394 = vxpose.xlu0.b32.cont [13/16] 0.0, 128
        %395 = vxpose.xlu0.b32.cont [14/16] 0.0, 128
        %396 = vxpose.xlu0.b32.cont [15/16] 0.0, 128
        %397 = vxpose.xlu0.b32.end [16/16] 0.0, 128
        %v398 = vpop.trf.xlu0
        %v399 = vpop.trf.xlu0
        %v400 = vpop.trf.xlu0
        %v401 = vpop.trf.xlu0
        %v402 = vpop.trf.xlu0
        %v403 = vpop.trf.xlu0
        %v404 = vpop.trf.xlu0
        %v405 = vpop.trf.xlu0
        %v406 = vpop.trf.xlu0
        %v407 = vpop.trf.xlu0
        %v408 = vpop.trf.xlu0
        %v409 = vpop.trf.xlu0
        %v410 = vpop.trf.xlu0
        %v411 = vpop.trf.xlu0
        %v412 = vpop.trf.xlu0
        %v413 = vpop.trf.xlu0
        %vm414 = vcmask 64512
        %v416 = vsel %vm414, %v398, 0
        %418 = vmatpush.msra.mxu0 %v348
        %419 = vmatpush.msra.mxu0 %v347
        %420 = vmatpush.msra.mxu0 %v346
        %421 = vmatpush.msra.mxu0 %v345
        %422 = vmatpush.msra.mxu0 %v344
        %423 = vmatpush.msra.mxu0 %v343
        %424 = vmatpush.msra.mxu0 %v342
        %425 = vmatpush.msra.mxu0 %v341
        %426 = vmatpush.msra.mxu0 %v340
        %427 = vmatpush.msra.mxu0 %v339
        %428 = vmatpush.msra.mxu0 %v338
        %429 = vmatpush.msra.mxu0 %v337
        %430 = vmatpush.msra.mxu0 %v336
        %431 = vmatpush.msra.mxu0 %v335
        %432 = vmatpush.msra.mxu0 %v334
        %433 = vmatpush.msra.mxu0 %v333
        %434 = vmatmul.f32.gmra.mxu0 %v366
        %v435 = vpop.f32.mrf.mxu0
        %v436 = vadd.f32 0.0, %v435
        %437 = vdwg.mxu0
        %438 = vmatpush.msra.mxu0 0.0
        %439 = vmatpush.msra.mxu0 0.0
        %440 = vmatpush.msra.mxu0 0.0
        %441 = vmatpush.msra.mxu0 0.0
        %442 = vmatpush.msra.mxu0 0.0
        %443 = vmatpush.msra.mxu0 0.0
        %444 = vmatpush.msra.mxu0 0.0
        %445 = vmatpush.msra.mxu0 0.0
        %446 = vmatpush.msra.mxu0 0.0
        %447 = vmatpush.msra.mxu0 0.0
        %448 = vmatpush.msra.mxu0 0.0
        %449 = vmatpush.msra.mxu0 0.0
        %450 = vmatpush.msra.mxu0 0.0
        %451 = vmatpush.msra.mxu0 0.0
        %452 = vmatpush.msra.mxu0 0.0
        %453 = vmatpush.msra.mxu0 %v349
        %454 = vmatmul.f32.gmra.mxu0 %v416
        %v455 = vpop.f32.mrf.mxu0
        %v456 = vadd.f32 %v436, %v455
        %457 = vdwg.mxu0
        %vm458 = vcmask 130048
        %459 = vst.msk [vmem:[%s204] sm:$0xff] %vm458, %v456
        %s460 = scalar_lea.vmem [#allocation2], 136
        %v461 = vld [vmem:[%s460] sm:$0xff]
        %v462 = vld [vmem:[%s460 + $0x8] sm:$0xff]
        %v463 = vld [vmem:[%s460 + $0x10] sm:$0xff]
        %v464 = vld [vmem:[%s460 + $0x18] sm:$0xff]
        %v465 = vld [vmem:[%s460 + $0x20] sm:$0xff]
        %v466 = vld [vmem:[%s460 + $0x28] sm:$0xff]
        %v467 = vld [vmem:[%s460 + $0x30] sm:$0xff]
        %v468 = vld [vmem:[%s460 + $0x38] sm:$0xff]
        %v469 = vld [vmem:[%s460 + $0x40] sm:$0xff]
        %v470 = vld [vmem:[%s460 + $0x48] sm:$0xff]
        %v471 = vld [vmem:[%s460 + $0x50] sm:$0xff]
        %v472 = vld [vmem:[%s460 + $0x58] sm:$0xff]
        %v473 = vld [vmem:[%s460 + $0x60] sm:$0xff]
        %v474 = vld [vmem:[%s460 + $0x68] sm:$0xff]
        %v475 = vld [vmem:[%s460 + $0x70] sm:$0xff]
        %v476 = vld [vmem:[%s460 + $0x78] sm:$0xff]
        %v477 = vld [vmem:[%s460 + $0x80] sm:$0xff]
        %s478 = scalar_lea.vmem %s219, 136
        %v479 = vld [vmem:[%s478] sm:$0xff]
        %v480 = vld [vmem:[%s478 + $0x8] sm:$0xff]
        %v481 = vld [vmem:[%s478 + $0x10] sm:$0xff]
        %v482 = vld [vmem:[%s478 + $0x18] sm:$0xff]
        %v483 = vld [vmem:[%s478 + $0x20] sm:$0xff]
        %v484 = vld [vmem:[%s478 + $0x28] sm:$0xff]
        %v485 = vld [vmem:[%s478 + $0x30] sm:$0xff]
        %v486 = vld [vmem:[%s478 + $0x38] sm:$0xff]
        %v487 = vld [vmem:[%s478 + $0x40] sm:$0xff]
        %v488 = vld [vmem:[%s478 + $0x48] sm:$0xff]
        %v489 = vld [vmem:[%s478 + $0x50] sm:$0xff]
        %v490 = vld [vmem:[%s478 + $0x58] sm:$0xff]
        %v491 = vld [vmem:[%s478 + $0x60] sm:$0xff]
        %v492 = vld [vmem:[%s478 + $0x68] sm:$0xff]
        %v493 = vld [vmem:[%s478 + $0x70] sm:$0xff]
        %v494 = vld [vmem:[%s478 + $0x78] sm:$0xff]
        %v495 = vld [vmem:[%s478 + $0x80] sm:$0xff]
        %496 = vxpose.xlu0.b32.start [1/16] %v461, 128
        %497 = vxpose.xlu0.b32.cont [2/16] %v462, 128
        %498 = vxpose.xlu0.b32.cont [3/16] %v463, 128
        %499 = vxpose.xlu0.b32.cont [4/16] %v464, 128
        %500 = vxpose.xlu0.b32.cont [5/16] %v465, 128
        %501 = vxpose.xlu0.b32.cont [6/16] %v466, 128
        %502 = vxpose.xlu0.b32.cont [7/16] %v467, 128
        %503 = vxpose.xlu0.b32.cont [8/16] %v468, 128
        %504 = vxpose.xlu0.b32.cont [9/16] %v469, 128
        %505 = vxpose.xlu0.b32.cont [10/16] %v470, 128
        %506 = vxpose.xlu0.b32.cont [11/16] %v471, 128
        %507 = vxpose.xlu0.b32.cont [12/16] %v472, 128
        %508 = vxpose.xlu0.b32.cont [13/16] %v473, 128
        %509 = vxpose.xlu0.b32.cont [14/16] %v474, 128
        %510 = vxpose.xlu0.b32.cont [15/16] %v475, 128
        %511 = vxpose.xlu0.b32.end [16/16] %v476, 128
        %v512 = vpop.trf.xlu0
        %v513 = vpop.trf.xlu0
        %v514 = vpop.trf.xlu0
        %v515 = vpop.trf.xlu0
        %v516 = vpop.trf.xlu0
        %v517 = vpop.trf.xlu0
        %v518 = vpop.trf.xlu0
        %v519 = vpop.trf.xlu0
        %v520 = vpop.trf.xlu0
        %v521 = vpop.trf.xlu0
        %v522 = vpop.trf.xlu0
        %v523 = vpop.trf.xlu0
        %v524 = vpop.trf.xlu0
        %v525 = vpop.trf.xlu0
        %v526 = vpop.trf.xlu0
        %v527 = vpop.trf.xlu0
        %528 = vxpose.xlu0.b32.start [1/16] %v477, 128
        %529 = vxpose.xlu0.b32.cont [2/16] 0.0, 128
        %530 = vxpose.xlu0.b32.cont [3/16] 0.0, 128
        %531 = vxpose.xlu0.b32.cont [4/16] 0.0, 128
        %532 = vxpose.xlu0.b32.cont [5/16] 0.0, 128
        %533 = vxpose.xlu0.b32.cont [6/16] 0.0, 128
        %534 = vxpose.xlu0.b32.cont [7/16] 0.0, 128
        %535 = vxpose.xlu0.b32.cont [8/16] 0.0, 128
        %536 = vxpose.xlu0.b32.cont [9/16] 0.0, 128
        %537 = vxpose.xlu0.b32.cont [10/16] 0.0, 128
        %538 = vxpose.xlu0.b32.cont [11/16] 0.0, 128
        %539 = vxpose.xlu0.b32.cont [12/16] 0.0, 128
        %540 = vxpose.xlu0.b32.cont [13/16] 0.0, 128
        %541 = vxpose.xlu0.b32.cont [14/16] 0.0, 128
        %542 = vxpose.xlu0.b32.cont [15/16] 0.0, 128
        %543 = vxpose.xlu0.b32.end [16/16] 0.0, 128
        %v544 = vpop.trf.xlu0
        %v545 = vpop.trf.xlu0
        %v546 = vpop.trf.xlu0
        %v547 = vpop.trf.xlu0
        %v548 = vpop.trf.xlu0
        %v549 = vpop.trf.xlu0
        %v550 = vpop.trf.xlu0
        %v551 = vpop.trf.xlu0
        %v552 = vpop.trf.xlu0
        %v553 = vpop.trf.xlu0
        %v554 = vpop.trf.xlu0
        %v555 = vpop.trf.xlu0
        %v556 = vpop.trf.xlu0
        %v557 = vpop.trf.xlu0
        %v558 = vpop.trf.xlu0
        %v559 = vpop.trf.xlu0
        %v561 = vsel %vm414, %v544, 0
        %563 = vmatpush.msra.mxu0 %v494
        %564 = vmatpush.msra.mxu0 %v493
        %565 = vmatpush.msra.mxu0 %v492
        %566 = vmatpush.msra.mxu0 %v491
        %567 = vmatpush.msra.mxu0 %v490
        %568 = vmatpush.msra.mxu0 %v489
        %569 = vmatpush.msra.mxu0 %v488
        %570 = vmatpush.msra.mxu0 %v487
        %571 = vmatpush.msra.mxu0 %v486
        %572 = vmatpush.msra.mxu0 %v485
        %573 = vmatpush.msra.mxu0 %v484
        %574 = vmatpush.msra.mxu0 %v483
        %575 = vmatpush.msra.mxu0 %v482
        %576 = vmatpush.msra.mxu0 %v481
        %577 = vmatpush.msra.mxu0 %v480
        %578 = vmatpush.msra.mxu0 %v479
        %579 = vmatmul.f32.gmra.mxu0 %v512
        %v580 = vpop.f32.mrf.mxu0
        %v581 = vadd.f32 0.0, %v580
        %582 = vdwg.mxu0
        %583 = vmatpush.msra.mxu0 0.0
        %584 = vmatpush.msra.mxu0 0.0
        %585 = vmatpush.msra.mxu0 0.0
        %586 = vmatpush.msra.mxu0 0.0
        %587 = vmatpush.msra.mxu0 0.0
        %588 = vmatpush.msra.mxu0 0.0
        %589 = vmatpush.msra.mxu0 0.0
        %590 = vmatpush.msra.mxu0 0.0
        %591 = vmatpush.msra.mxu0 0.0
        %592 = vmatpush.msra.mxu0 0.0
        %593 = vmatpush.msra.mxu0 0.0
        %594 = vmatpush.msra.mxu0 0.0
        %595 = vmatpush.msra.mxu0 0.0
        %596 = vmatpush.msra.mxu0 0.0
        %597 = vmatpush.msra.mxu0 0.0
        %598 = vmatpush.msra.mxu0 %v495
        %599 = vmatmul.f32.gmra.mxu0 %v561
        %v600 = vpop.f32.mrf.mxu0
        %v601 = vadd.f32 %v581, %v600
        %602 = vdwg.mxu0
        %s603 = scalar_lea.vmem %s204, 8 [#allocation3]
        %604 = vst.msk [vmem:[%s603] sm:$0xff] %vm458, %v601
        %s605 = sand.u32 %s114, 1
        %s606 = scalar_lea.sflag [#allocation4], %s605
        %s607 = sand.u32 %s114, 1
        %s608 = smul.addr %s607, 16
        %s609 = scalar_lea.vmem [#allocation3], %s608
        // Predicated region
        $region37: #{tpu_custom_call.1} parent=31 // pred_check
          %p610 = pneg %p124
        $region38: #{tpu_custom_call.1} parent=31 // pred_check_branch
          %612 = sbr.rel (%p610) target = $region40
        $region39: #{tpu_custom_call.1} parent=31 // pred_region
          %s613 = smul.u32 2, %s21
          %615 = vsyncadd %s606, 0
          %s616 = sadd.s32 %s22, %s613
          %s617 = smul.addr %s616, 8
          %s618 = scalar_lea.hbm %s3, %s617
          %s619 = sshll.u32 %s609, 4
          %s620 = int_to_ptr.vmem [resolvable:$true] %s619
          %s621 = sshll.u32 %s618, 4
          %s622 = int_to_ptr.hbm [resolvable:$true] %s621
          %627 = dma.vmem_to_hbm [thread:$0]  %s620, 256, %s622, %s606, 128, 128, 8
        $region40: #{tpu_custom_call.1} parent=31 // pred_fallthru
          _
      $region32: #{tpu_custom_call.1} parent=5 // pred_fallthru
        _
      %p628 = scmp.le.s32.totalorder 2, %s12
      // Predicated region
      $region41: #{tpu_custom_call.1} parent=5 // pred_check
        %p629 = pneg %p628
      $region42: #{tpu_custom_call.1} parent=5 // pred_check_branch
        %631 = sbr.rel (%p629) target = $region44
      $region43: #{tpu_custom_call.1} parent=5 // pred_region
        %s632 = ssub.s32 %s12, 2
        // Predicated region
        $region45: #{tpu_custom_call.1} parent=43 // pred_check
          %p633 = pneg %p130
        $region46: #{tpu_custom_call.1} parent=43 // pred_check_branch
          %635 = sbr.rel (%p633) target = $region48
        $region47: #{tpu_custom_call.1} parent=43 // pred_region
          %s636 = sand.u32 %s115, 1
          %s637 = scalar_lea.sflag [#allocation4], %s636
          %s638 = sand.u32 %s115, 1
          %s639 = smul.addr %s638, 16
          %s640 = scalar_lea.vmem [#allocation3], %s639
          %642 = dma.done %s637, 256
        $region48: #{tpu_custom_call.1} parent=43 // pred_fallthru
          _
      $region44: #{tpu_custom_call.1} parent=5 // pred_fallthru
        _
    $region6: #{tpu_custom_call.1} parent=1 // loop_footer
      %s16 = sadd.s32 1, %s12
    $region7: #{tpu_custom_call.1} parent=1 // loop_footer_branch
      %11 = sbr.rel target = $region3
    $region8: #{tpu_custom_call.1} parent=1 // loop_exit
      _
    %643 = vsyncpa [#allocation4], 1
    %s644 = scalar_lea.sflag [#allocation4], 1
    %645 = vsyncpa %s644, 1

</llo_original>
